<compile_context>
chip_gen: v7x
topology: tpu7x:2x2x1
jax: 0.10.0
libtpu: 0.0.40
codegen_flags: <defaults>
</compile_context>

<pallas_src>
import functools

import jax
import jax.numpy as jnp
from jax import lax
from jax.experimental import pallas as pl
from jax.experimental.pallas import tpu as pltpu


# ---------------------------------------------------------------------------
# Per-generation sizing helpers
# ---------------------------------------------------------------------------

def _vmem_budget():
    """~75% of physical per-core VMEM (v5e/v6e: 128 MiB, v7x: 64 MiB)."""
    try:
        info = pltpu.get_tpu_info()
        cap = getattr(info, "vmem_capacity_bytes", None)
        if cap:
            return int(cap) * 3 // 4
    except Exception:
        pass
    return 48 << 20  # conservative (v7x-sized) fallback


def _pad_lanes(w):
    p = pl.cdiv(w, 128) * 128
    return p, p - w


def _pick_tm(n, cap_rows):
    """Largest multiple-of-8 row tile dividing n, <= cap and <= n//2."""
    if n <= 16:
        return n
    hi = max(8, min(int(cap_rows), n // 2, 1024))
    hi = max(8, (hi // 8) * 8)
    t = hi
    while t >= 8:
        if n % t == 0:
            return t
        t -= 8
    # TODO(synk): pad N to a multiple of 256 for awkward row counts.
    return n


def _rows_cap(n, out_w_f32, resident_bytes, adj_bytes, budget):
    """Max row-tile height fitting double-buffered adj + output tiles."""
    per_row = 2 * n * adj_bytes + 2 * out_w_f32 * 4
    avail = int(budget * 0.8) - resident_bytes - (2 << 20)
    return max(8, avail // max(per_row, 1))


# ---------------------------------------------------------------------------
# Kernels — resident (adj-in-VMEM) path
# ---------------------------------------------------------------------------

def _fused_chain_kernel(z_ref, adj_ref, w4_ref, w5_ref, w6_ref,
                        z1_ref, az1_ref, z2_ref, az2_ref, zh_ref, az3_ref):
    # Whole GNN chain with the adjacency VMEM-resident: adj read from HBM once.
    f32 = jnp.float32
    adj = adj_ref[...]
    adt = adj.dtype
    s1 = jnp.tanh(jnp.dot(z_ref[...], w4_ref[...], preferred_element_type=f32))
    z1 = jnp.dot(adj, s1.astype(adt), preferred_element_type=f32)
    az1 = jnp.dot(adj, z1.astype(adt), preferred_element_type=f32)
    s2 = jnp.tanh(jnp.dot(z1, w5_ref[...], preferred_element_type=f32))
    z2 = jnp.dot(adj, s2.astype(adt), preferred_element_type=f32)
    az2 = jnp.dot(adj, z2.astype(adt), preferred_element_type=f32)
    s3 = jnp.tanh(jnp.dot(z2, w6_ref[...], preferred_element_type=f32))
    zh = jnp.dot(adj, s3.astype(adt), preferred_element_type=f32)
    az3 = jnp.dot(adj, zh.astype(adt), preferred_element_type=f32)
    z1_ref[...] = z1
    az1_ref[...] = az1
    z2_ref[...] = z2
    az2_ref[...] = az2
    zh_ref[...] = zh
    az3_ref[...] = az3


def _zadj_kernel(zh_ref, out_ref, *, tm):
    # Row tile of sigmoid(z_hat @ z_hat.T); z_hat full-resident, rows sliced
    # in-kernel (no duplicate per-tile input stream), no explicit transpose.
    i = pl.program_id(0)
    r0 = pl.multiple_of(i * tm, tm)
    zr = zh_ref[pl.ds(r0, tm), :]
    zz = lax.dot_general(zr, zh_ref[...],
                         dimension_numbers=(((1,), (1,)), ((), ())),
                         preferred_element_type=jnp.float32)
    out_ref[...] = jax.nn.sigmoid(zz).astype(out_ref.dtype)


# ---------------------------------------------------------------------------
# Kernels — streaming (row-tiled adj) path
# ---------------------------------------------------------------------------

def _feat_tanh_kernel(x_ref, w_ref, out_ref):
    # s1 = tanh(z @ W4), emitted directly in the adjacency dtype so the
    # consuming pass needs no in-kernel cast.
    out_ref[...] = jnp.tanh(
        jnp.dot(x_ref[...], w_ref[...], preferred_element_type=jnp.float32)
    ).astype(out_ref.dtype)


def _adj_pass_kernel(adj_ref, rhs_ref, w_ref, out_ref, *, kin, pad):
    # p = adj_tile @ rhs ; s = tanh(p[:, :kin] @ W) ; out = [s | p | 0-pad]
    # (the slice feeding the second MXU op starts at lane 0).
    p = jnp.dot(adj_ref[...], rhs_ref[...], preferred_element_type=jnp.float32)
    s = jnp.tanh(jnp.dot(p[:, :kin], w_ref[...],
                         preferred_element_type=jnp.float32))
    parts = [s, p]
    if pad:
        parts.append(jnp.zeros((p.shape[0], pad), jnp.float32))
    out_ref[...] = jnp.concatenate(parts, axis=-1)


def _adj_matmul_kernel(adj_ref, rhs_ref, out_ref, *, pad):
    # out = [adj_tile @ rhs | 0-pad]
    p = jnp.dot(adj_ref[...], rhs_ref[...], preferred_element_type=jnp.float32)
    if pad:
        p = jnp.concatenate(
            [p, jnp.zeros((p.shape[0], pad), jnp.float32)], axis=-1)
    out_ref[...] = p


def _final_pass_kernel(adj_ref, zh_ref, az3_ref, zadj_ref, *, tm, pad):
    # az3 tile = adj_tile @ z_hat, fused with the z_hat_adj row tile
    # (z_hat rows sliced from the already-resident full block).
    zf = zh_ref[...]
    az3 = jnp.dot(adj_ref[...], zf, preferred_element_type=jnp.float32)
    if pad:
        az3 = jnp.concatenate(
            [az3, jnp.zeros((az3.shape[0], pad), jnp.float32)], axis=-1)
    az3_ref[...] = az3
    i = pl.program_id(0)
    r0 = pl.multiple_of(i * tm, tm)
    zr = zh_ref[pl.ds(r0, tm), :]
    zz = lax.dot_general(zr, zf,
                         dimension_numbers=(((1,), (1,)), ((), ())),
                         preferred_element_type=jnp.float32)
    zadj_ref[...] = jax.nn.sigmoid(zz).astype(zadj_ref.dtype)


# ---------------------------------------------------------------------------
# Wrapper
# ---------------------------------------------------------------------------

def igae_decoder(z_igae, adj, w4, w5, w6, *, use_bf16=True,
                 force_streaming=False, zadj_dtype=jnp.float32):
    """IGAE_decoder forward.

    Returns (z_hat, z_hat_adj, [az_1, az_2, az_3], [z_1, z_2, z_hat]).
    """
    f32 = jnp.float32
    n, d1 = z_igae.shape
    d2 = w4.shape[1]
    d3 = w5.shape[1]
    n_input = w6.shape[1]

    adj_dtype = jnp.bfloat16 if use_bf16 else f32
    adj_bytes = 2 if use_bf16 else 4
    adj_mx = adj.astype(adj_dtype)

    budget = _vmem_budget()
    vmem = pl.BlockSpec(memory_space=pltpu.MemorySpace.VMEM)

    # --- resident gate: adjacency + narrow intermediates fit in VMEM -------
    resident_bytes = (n * n * adj_bytes
                      + n * (d1 + 4 * d2 + 4 * d3 + 4 * n_input) * 4
                      + (4 << 20))
    use_resident = (not force_streaming) and resident_bytes <= int(budget * 0.8)

    if use_resident:
        z1, az1, z2, az2, z_hat, az3 = pl.pallas_call(
            _fused_chain_kernel,
            out_shape=(
                jax.ShapeDtypeStruct((n, d2), f32),
                jax.ShapeDtypeStruct((n, d2), f32),
                jax.ShapeDtypeStruct((n, d3), f32),
                jax.ShapeDtypeStruct((n, d3), f32),
                jax.ShapeDtypeStruct((n, n_input), f32),
                jax.ShapeDtypeStruct((n, n_input), f32),
            ),
            in_specs=[vmem] * 5,
            out_specs=(vmem,) * 6,
            compiler_params=pltpu.CompilerParams(vmem_limit_bytes=budget),
        )(z_igae, adj_mx, w4, w5, w6)

        # z_hat_adj in a separate row-tiled "parallel" call: the (N, N) output
        # streams out in tiles and both v7x TensorCores share the N^2 work.
        cap = _rows_cap(n, n, n * n_input * 4, 0, budget)
        tm = _pick_tm(n, cap)
        z_hat_adj = pl.pallas_call(
            functools.partial(_zadj_kernel, tm=tm),
            out_shape=jax.ShapeDtypeStruct((n, n), zadj_dtype),
            grid=(n // tm,),
            in_specs=[pl.BlockSpec((n, n_input), lambda i: (0, 0))],
            out_specs=pl.BlockSpec((tm, n), lambda i: (i, 0)),
            compiler_params=pltpu.CompilerParams(
                dimension_semantics=("parallel",), vmem_limit_bytes=budget),
        )(z_hat)
        return z_hat, z_hat_adj, [az1, az2, az3], [z1, z2, z_hat]

    # --- streaming path: four row-tiled passes over adj --------------------
    stream_params = pltpu.CompilerParams(
        dimension_semantics=("parallel",), vmem_limit_bytes=budget)

    def adj_spec(tm):
        return pl.BlockSpec((tm, n), lambda i: (i, 0))

    def full_spec(r, c):
        return pl.BlockSpec((r, c), lambda i: (0, 0))

    def row_spec(tm, w):
        return pl.BlockSpec((tm, w), lambda i: (i, 0))

    # s1 = tanh(z @ W4)  (tiny, grid-less), emitted in the adjacency dtype.
    s1 = pl.pallas_call(
        _feat_tanh_kernel,
        out_shape=jax.ShapeDtypeStruct((n, d2), adj_dtype),
        in_specs=[vmem, vmem],
        out_specs=vmem,
        compiler_params=pltpu.CompilerParams(vmem_limit_bytes=budget),
    )(z_igae, w4)

    # pass 1: [s2 | z1]
    w1 = d3 + d2
    p1, pad1 = _pad_lanes(w1)
    tm1 = _pick_tm(n, _rows_cap(n, p1, n * d2 * adj_bytes, adj_bytes, budget))
    out1 = pl.pallas_call(
        functools.partial(_adj_pass_kernel, kin=d2, pad=pad1),
        out_shape=jax.ShapeDtypeStruct((n, p1), f32),
        grid=(n // tm1,),
        in_specs=[adj_spec(tm1), full_spec(n, d2), full_spec(d2, d3)],
        out_specs=row_spec(tm1, p1),
        compiler_params=stream_params,
    )(adj_mx, s1, w5)
    z1 = out1[:, d3:w1]
    rhs2 = out1[:, :w1].astype(adj_dtype)              # [s2 | z1], cast once

    # pass 2: [s3 | z2 | az1]
    w2 = n_input + d3 + d2
    p2, pad2 = _pad_lanes(w2)
    tm2 = _pick_tm(n, _rows_cap(n, p2, n * w1 * adj_bytes, adj_bytes, budget))
    out2 = pl.pallas_call(
        functools.partial(_adj_pass_kernel, kin=d3, pad=pad2),
        out_shape=jax.ShapeDtypeStruct((n, p2), f32),
        grid=(n // tm2,),
        in_specs=[adj_spec(tm2), full_spec(n, w1), full_spec(d3, n_input)],
        out_specs=row_spec(tm2, p2),
        compiler_params=stream_params,
    )(adj_mx, rhs2, w6)
    z2 = out2[:, n_input:n_input + d3]
    az1 = out2[:, n_input + d3:w2]
    rhs3 = out2[:, :n_input + d3].astype(adj_dtype)    # [s3 | z2], cast once

    # pass 3: [z_hat | az2]
    w3 = n_input + d3
    p3, pad3 = _pad_lanes(w3)
    tm3 = _pick_tm(n, _rows_cap(n, p3, n * w3 * adj_bytes, adj_bytes, budget))
    out3 = pl.pallas_call(
        functools.partial(_adj_matmul_kernel, pad=pad3),
        out_shape=jax.ShapeDtypeStruct((n, p3), f32),
        grid=(n // tm3,),
        in_specs=[adj_spec(tm3), full_spec(n, w3)],
        out_specs=row_spec(tm3, p3),
        compiler_params=stream_params,
    )(adj_mx, rhs3)
    z_hat = out3[:, :n_input]
    az2 = out3[:, n_input:w3]
    zh_c = z_hat.astype(adj_dtype)                     # cast once in wrapper

    # pass 4 (fused): az3 = adj @ z_hat ;  z_hat_adj row tiles.
    p4, pad4 = _pad_lanes(n_input)
    tm4 = _pick_tm(
        n, _rows_cap(n, p4 + n, n * n_input * adj_bytes, adj_bytes, budget))
    az3p, z_hat_adj = pl.pallas_call(
        functools.partial(_final_pass_kernel, tm=tm4, pad=pad4),
        out_shape=(jax.ShapeDtypeStruct((n, p4), f32),
                   jax.ShapeDtypeStruct((n, n), zadj_dtype)),
        grid=(n // tm4,),
        in_specs=[adj_spec(tm4), full_spec(n, n_input)],
        out_specs=(row_spec(tm4, p4), row_spec(tm4, n)),
        compiler_params=stream_params,
    )(adj_mx, zh_c)
    az3 = az3p[:, :n_input]

    return z_hat, z_hat_adj, [az1, az2, az3], [z1, z2, z_hat]


# ---------------------------------------------------------------------------
# Reference / test harness
# ---------------------------------------------------------------------------

def _xavier_uniform(key, fan_in, fan_out):
    limit = (6.0 / (fan_in + fan_out)) ** 0.5
    return jax.random.uniform(key, (fan_in, fan_out), jnp.float32, -limit, limit)


def _reference(z, adj, w4, w5, w6):
    s1 = jnp.tanh(z @ w4); z1 = adj @ s1; az1 = adj @ z1
    s2 = jnp.tanh(z1 @ w5); z2 = adj @ s2; az2 = adj @ z2
    s3 = jnp.tanh(z2 @ w6); zh = adj @ s3; az3 = adj @ zh
    zha = jax.nn.sigmoid(zh @ zh.T)
    return zh, zha, [az1, az2, az3], [z1, z2, zh]


def _check(got, ref, atol, rtol):
    g_zh, g_za, g_az, g_z = got
    r_zh, r_za, r_az, r_z = ref
    pairs = ([(g_zh, r_zh), (g_za, r_za)]
             + list(zip(g_az, r_az)) + list(zip(g_z, r_z)))
    for a, b in pairs:
        a = jnp.asarray(a, jnp.float32)
        assert bool(jnp.allclose(a, b, atol=atol, rtol=rtol)), "output mismatch"


if __name__ == "__main__":
    # Decoder-consistent small sizes:
    #   gae_n_dec_1=32, gae_n_dec_2=16, gae_n_dec_3=16, n_input=32, N=64 nodes
    N, D1, D2, D3, N_INPUT = 64, 32, 16, 16, 32

    key = jax.random.PRNGKey(0)
    k_z, k_adj, k_w4, k_w5, k_w6 = jax.random.split(key, 5)

    z_igae = jax.random.normal(k_z, (N, D1), jnp.float32)
    # Synthetic row-normalized dense adjacency (stand-in for torch.spmm's adj).
    a_raw = jax.random.uniform(k_adj, (N, N), jnp.float32)
    adj = a_raw / jnp.sum(a_raw, axis=1, keepdims=True)

    w4 = _xavier_uniform(k_w4, D1, D2)
    w5 = _xavier_uniform(k_w5, D2, D3)
    w6 = _xavier_uniform(k_w6, D3, N_INPUT)

    ref = _reference(z_igae, adj, w4, w5, w6)

    # f32, adj-resident fused path: strict check.
    out = igae_decoder(z_igae, adj, w4, w5, w6, use_bf16=False)
    jax.block_until_ready(out)
    _check(out, ref, atol=1e-4, rtol=1e-4)

    # f32, streaming (row-tiled) path: strict check.
    out = igae_decoder(z_igae, adj, w4, w5, w6, use_bf16=False,
                       force_streaming=True)
    jax.block_until_ready(out)
    _check(out, ref, atol=1e-4, rtol=1e-4)

    # bf16 adjacency (the default) on both paths: loose tolerance.
    out = igae_decoder(z_igae, adj, w4, w5, w6)
    jax.block_until_ready(out)
    _check(out, ref, atol=5e-2, rtol=5e-2)

    out = igae_decoder(z_igae, adj, w4, w5, w6, force_streaming=True)
    jax.block_until_ready(out)
    _check(out, ref, atol=5e-2, rtol=5e-2)

    print("KERNEL_OK")
</pallas_src>

<mosaic_0001>
module attributes {stable_mosaic.version = 11 : i64} {
  func.func @_fused_chain_kernel(%arg0: memref<64x32xf32, #tpu.memory_space<vmem>>, %arg1: memref<64x64xf32, #tpu.memory_space<vmem>>, %arg2: memref<32x16xf32, #tpu.memory_space<vmem>>, %arg3: memref<16x16xf32, #tpu.memory_space<vmem>>, %arg4: memref<16x32xf32, #tpu.memory_space<vmem>>, %arg5: memref<64x16xf32, #tpu.memory_space<vmem>>, %arg6: memref<64x16xf32, #tpu.memory_space<vmem>>, %arg7: memref<64x16xf32, #tpu.memory_space<vmem>>, %arg8: memref<64x16xf32, #tpu.memory_space<vmem>>, %arg9: memref<64x32xf32, #tpu.memory_space<vmem>>, %arg10: memref<64x32xf32, #tpu.memory_space<vmem>>) attributes {dimension_semantics = [], scalar_prefetch = 0 : i64, scratch_operands = 0 : i64, tpu.core_type = #tpu.core_type<tc>} {
    %c0 = arith.constant 0 : index
    %c0_0 = arith.constant 0 : index
    %0 = vector.load %arg1[%c0, %c0_0] : memref<64x64xf32, #tpu.memory_space<vmem>>, vector<64x64xf32>
    %c0_1 = arith.constant 0 : index
    %c0_2 = arith.constant 0 : index
    %1 = vector.load %arg0[%c0_1, %c0_2] : memref<64x32xf32, #tpu.memory_space<vmem>>, vector<64x32xf32>
    %c0_3 = arith.constant 0 : index
    %c0_4 = arith.constant 0 : index
    %2 = vector.load %arg2[%c0_3, %c0_4] : memref<32x16xf32, #tpu.memory_space<vmem>>, vector<32x16xf32>
    %cst = arith.constant dense<0.000000e+00> : vector<64x16xf32>
    %3 = tpu.matmul %1, %2, %cst {dimension_numbers = #tpu.dot_dimension_numbers<[1], [0], [0], [1], [0, 0, 1, 1], [], []>} : vector<64x32xf32>, vector<32x16xf32>, vector<64x16xf32> -> vector<64x16xf32>
    %4 = math.tanh %3 : vector<64x16xf32>
    %cst_5 = arith.constant dense<0.000000e+00> : vector<64x16xf32>
    %5 = tpu.matmul %0, %4, %cst_5 {dimension_numbers = #tpu.dot_dimension_numbers<[1], [0], [0], [1], [0, 0, 1, 1], [], []>} : vector<64x64xf32>, vector<64x16xf32>, vector<64x16xf32> -> vector<64x16xf32>
    %cst_6 = arith.constant dense<0.000000e+00> : vector<64x16xf32>
    %6 = tpu.matmul %0, %5, %cst_6 {dimension_numbers = #tpu.dot_dimension_numbers<[1], [0], [0], [1], [0, 0, 1, 1], [], []>} : vector<64x64xf32>, vector<64x16xf32>, vector<64x16xf32> -> vector<64x16xf32>
    %c0_7 = arith.constant 0 : index
    %c0_8 = arith.constant 0 : index
    %7 = vector.load %arg3[%c0_7, %c0_8] : memref<16x16xf32, #tpu.memory_space<vmem>>, vector<16x16xf32>
    %cst_9 = arith.constant dense<0.000000e+00> : vector<64x16xf32>
    %8 = tpu.matmul %5, %7, %cst_9 {dimension_numbers = #tpu.dot_dimension_numbers<[1], [0], [0], [1], [0, 0, 1, 1], [], []>} : vector<64x16xf32>, vector<16x16xf32>, vector<64x16xf32> -> vector<64x16xf32>
    %9 = math.tanh %8 : vector<64x16xf32>
    %cst_10 = arith.constant dense<0.000000e+00> : vector<64x16xf32>
    %10 = tpu.matmul %0, %9, %cst_10 {dimension_numbers = #tpu.dot_dimension_numbers<[1], [0], [0], [1], [0, 0, 1, 1], [], []>} : vector<64x64xf32>, vector<64x16xf32>, vector<64x16xf32> -> vector<64x16xf32>
    %cst_11 = arith.constant dense<0.000000e+00> : vector<64x16xf32>
    %11 = tpu.matmul %0, %10, %cst_11 {dimension_numbers = #tpu.dot_dimension_numbers<[1], [0], [0], [1], [0, 0, 1, 1], [], []>} : vector<64x64xf32>, vector<64x16xf32>, vector<64x16xf32> -> vector<64x16xf32>
    %c0_12 = arith.constant 0 : index
    %c0_13 = arith.constant 0 : index
    %12 = vector.load %arg4[%c0_12, %c0_13] : memref<16x32xf32, #tpu.memory_space<vmem>>, vector<16x32xf32>
    %cst_14 = arith.constant dense<0.000000e+00> : vector<64x32xf32>
    %13 = tpu.matmul %10, %12, %cst_14 {dimension_numbers = #tpu.dot_dimension_numbers<[1], [0], [0], [1], [0, 0, 1, 1], [], []>} : vector<64x16xf32>, vector<16x32xf32>, vector<64x32xf32> -> vector<64x32xf32>
    %14 = math.tanh %13 : vector<64x32xf32>
    %cst_15 = arith.constant dense<0.000000e+00> : vector<64x32xf32>
    %15 = tpu.matmul %0, %14, %cst_15 {dimension_numbers = #tpu.dot_dimension_numbers<[1], [0], [0], [1], [0, 0, 1, 1], [], []>} : vector<64x64xf32>, vector<64x32xf32>, vector<64x32xf32> -> vector<64x32xf32>
    %cst_16 = arith.constant dense<0.000000e+00> : vector<64x32xf32>
    %16 = tpu.matmul %0, %15, %cst_16 {dimension_numbers = #tpu.dot_dimension_numbers<[1], [0], [0], [1], [0, 0, 1, 1], [], []>} : vector<64x64xf32>, vector<64x32xf32>, vector<64x32xf32> -> vector<64x32xf32>
    %c0_17 = arith.constant 0 : index
    %c0_18 = arith.constant 0 : index
    %17 = vector.load %arg5[%c0_17, %c0_18] : memref<64x16xf32, #tpu.memory_space<vmem>>, vector<64x16xf32>
    tpu.vector_store %arg5[%c0_17, %c0_18], %5 {strides = array<i32>} : memref<64x16xf32, #tpu.memory_space<vmem>>, vector<64x16xf32>,
    %c0_19 = arith.constant 0 : index
    %c0_20 = arith.constant 0 : index
    %18 = vector.load %arg6[%c0_19, %c0_20] : memref<64x16xf32, #tpu.memory_space<vmem>>, vector<64x16xf32>
    tpu.vector_store %arg6[%c0_19, %c0_20], %6 {strides = array<i32>} : memref<64x16xf32, #tpu.memory_space<vmem>>, vector<64x16xf32>,
    %c0_21 = arith.constant 0 : index
    %c0_22 = arith.constant 0 : index
    %19 = vector.load %arg7[%c0_21, %c0_22] : memref<64x16xf32, #tpu.memory_space<vmem>>, vector<64x16xf32>
    tpu.vector_store %arg7[%c0_21, %c0_22], %10 {strides = array<i32>} : memref<64x16xf32, #tpu.memory_space<vmem>>, vector<64x16xf32>,
    %c0_23 = arith.constant 0 : index
    %c0_24 = arith.constant 0 : index
    %20 = vector.load %arg8[%c0_23, %c0_24] : memref<64x16xf32, #tpu.memory_space<vmem>>, vector<64x16xf32>
    tpu.vector_store %arg8[%c0_23, %c0_24], %11 {strides = array<i32>} : memref<64x16xf32, #tpu.memory_space<vmem>>, vector<64x16xf32>,
    %c0_25 = arith.constant 0 : index
    %c0_26 = arith.constant 0 : index
    %21 = vector.load %arg9[%c0_25, %c0_26] : memref<64x32xf32, #tpu.memory_space<vmem>>, vector<64x32xf32>
    tpu.vector_store %arg9[%c0_25, %c0_26], %15 {strides = array<i32>} : memref<64x32xf32, #tpu.memory_space<vmem>>, vector<64x32xf32>,
    %c0_27 = arith.constant 0 : index
    %c0_28 = arith.constant 0 : index
    %22 = vector.load %arg10[%c0_27, %c0_28] : memref<64x32xf32, #tpu.memory_space<vmem>>, vector<64x32xf32>
    tpu.vector_store %arg10[%c0_27, %c0_28], %16 {strides = array<i32>} : memref<64x32xf32, #tpu.memory_space<vmem>>, vector<64x32xf32>,
    return
  }
}

</mosaic_0001>

<llo_original>
// kernel: tpu_custom_call.1
$region0: #{tpu_custom_call.1}
  #allocation0 [shape = 'u32[]', space=smem, size = 0x4, offset = 0x4, fixed_abs, tag = 'smem constant byte address 0x4 - core index']
  #allocation1 [shape = 'u32[144,128]{1,0:T(1,128)}', space=vmem, size = 0x12000, scoped, tag = 'internal scratch']
  %s0 = inlined_call_operand.vmem [shape: f32[64,32], index: 0, kind: input, shape index: {}]
  %s1 = inlined_call_operand.vmem [shape: f32[64,64], index: 1, kind: input, shape index: {}]
  %s2 = inlined_call_operand.vmem [shape: f32[32,16], index: 2, kind: input, shape index: {}]
  %s3 = inlined_call_operand.vmem [shape: f32[16,16], index: 3, kind: input, shape index: {}]
  %s4 = inlined_call_operand.vmem [shape: f32[16,32], index: 4, kind: input, shape index: {}]
  %s5 = inlined_call_operand.vmem [shape: f32[64,16], index: 5, kind: output, shape index: {0}]
  %s6 = inlined_call_operand.vmem [shape: f32[64,16], index: 6, kind: output, shape index: {1}]
  %s7 = inlined_call_operand.vmem [shape: f32[64,16], index: 7, kind: output, shape index: {2}]
  %s8 = inlined_call_operand.vmem [shape: f32[64,16], index: 8, kind: output, shape index: {3}]
  %s9 = inlined_call_operand.vmem [shape: f32[64,32], index: 9, kind: output, shape index: {4}]
  %s10 = inlined_call_operand.vmem [shape: f32[64,32], index: 10, kind: output, shape index: {5}]
  %11 = xla_tuple %s5, %s6, %s7, %s8, %s9, %s10
  %s12 = sld [smem:[#allocation0]]
  $region70: #{tpu_custom_call.1} parent=0
    _
  %s14 = ssub.s32 1, %s12
  %s15 = scalar_select 0, %s14, %s12
  // Predicated region
  $region2: #{tpu_custom_call.1} parent=0 // pred_check
    _
  $region3: #{tpu_custom_call.1} parent=0 // pred_check_branch
    %17 = sbr.rel (0) target = $region5
  $region4: #{tpu_custom_call.1} parent=0 // pred_region
    _
  $region5: #{tpu_custom_call.1} parent=0 // pred_fallthru
    _
  // Predicated region
  $region6: #{tpu_custom_call.1} parent=0 // pred_check
    _
  $region7: #{tpu_custom_call.1} parent=0 // pred_check_branch
    %19 = sbr.rel (0) target = $region9
  $region8: #{tpu_custom_call.1} parent=0 // pred_region
    _
  $region9: #{tpu_custom_call.1} parent=0 // pred_fallthru
    _
  // Predicated region
  $region10: #{tpu_custom_call.1} parent=0 // pred_check
    _
  $region11: #{tpu_custom_call.1} parent=0 // pred_check_branch
    %21 = sbr.rel (0) target = $region13
  $region12: #{tpu_custom_call.1} parent=0 // pred_region
    _
  $region13: #{tpu_custom_call.1} parent=0 // pred_fallthru
    _
  // Predicated region
  $region14: #{tpu_custom_call.1} parent=0 // pred_check
    _
  $region15: #{tpu_custom_call.1} parent=0 // pred_check_branch
    %23 = sbr.rel (0) target = $region17
  $region16: #{tpu_custom_call.1} parent=0 // pred_region
    _
  $region17: #{tpu_custom_call.1} parent=0 // pred_fallthru
    _
  // Predicated region
  $region18: #{tpu_custom_call.1} parent=0 // pred_check
    _
  $region19: #{tpu_custom_call.1} parent=0 // pred_check_branch
    %25 = sbr.rel (0) target = $region21
  $region20: #{tpu_custom_call.1} parent=0 // pred_region
    _
  $region21: #{tpu_custom_call.1} parent=0 // pred_fallthru
    _
  %v26 = vld [vmem:[%s1] sm:$0xff]
  %v27 = vld [vmem:[%s1 + $0x8] sm:$0xff]
  %v28 = vld [vmem:[%s1 + $0x10] sm:$0xff]
  %v29 = vld [vmem:[%s1 + $0x18] sm:$0xff]
  %v30 = vld [vmem:[%s1 + $0x20] sm:$0xff]
  %v31 = vld [vmem:[%s1 + $0x28] sm:$0xff]
  %v32 = vld [vmem:[%s1 + $0x30] sm:$0xff]
  %v33 = vld [vmem:[%s1 + $0x38] sm:$0xff]
  %v34 = vld [vmem:[%s0] sm:$0xff]
  %v35 = vld [vmem:[%s0 + $0x8] sm:$0xff]
  %v36 = vld [vmem:[%s0 + $0x10] sm:$0xff]
  %v37 = vld [vmem:[%s0 + $0x18] sm:$0xff]
  %v38 = vld [vmem:[%s0 + $0x20] sm:$0xff]
  %v39 = vld [vmem:[%s0 + $0x28] sm:$0xff]
  %v40 = vld [vmem:[%s0 + $0x30] sm:$0xff]
  %v41 = vld [vmem:[%s0 + $0x38] sm:$0xff]
  %v42 = vld [vmem:[%s2] sm:$0xff]
  %v43 = vld [vmem:[%s2 + $0x8] sm:$0xff]
  %v44 = vld [vmem:[%s2 + $0x10] sm:$0xff]
  %v45 = vld [vmem:[%s2 + $0x18] sm:$0xff]
  %vm46 = vcmask 261120
  %v48 = vsel %vm46, %v34, 0
  %v51 = vsel %vm46, %v35, 0
  %v54 = vsel %vm46, %v36, 0
  %v57 = vsel %vm46, %v37, 0
  %v60 = vsel %vm46, %v38, 0
  %v63 = vsel %vm46, %v39, 0
  %v66 = vsel %vm46, %v40, 0
  %v69 = vsel %vm46, %v41, 0
  %71 = vmatprep.subr.mxu0 0.0
  %72 = vmatpush1.msra.mxu0 %v42
  %73 = vmatprep.subr.mxu0 0.0
  %74 = vmatpush1.msra.mxu0 %v43
  %75 = vmatprep.subr.mxu0 0.0
  %76 = vmatpush1.msra.mxu0 %v44
  %77 = vmatprep.subr.mxu0 0.0
  %78 = vmatpush1.msra.mxu0 %v45
  %79 = vmatprep.subr.mxu0 0.0
  %80 = vmatpush1.msra.mxu0 0.0
  %81 = vmatprep.subr.mxu0 0.0
  %82 = vmatpush1.msra.mxu0 0.0
  %83 = vmatprep.subr.mxu0 0.0
  %84 = vmatpush1.msra.mxu0 0.0
  %85 = vmatprep.subr.mxu0 0.0
  %86 = vmatpush1.msra.mxu0 0.0
  %87 = vmatprep.subr.mxu0 0.0
  %88 = vmatpush1.msra.mxu0 0.0
  %89 = vmatprep.subr.mxu0 0.0
  %90 = vmatpush1.msra.mxu0 0.0
  %91 = vmatprep.subr.mxu0 0.0
  %92 = vmatpush1.msra.mxu0 0.0
  %93 = vmatprep.subr.mxu0 0.0
  %94 = vmatpush1.msra.mxu0 0.0
  %95 = vmatprep.subr.mxu0 0.0
  %96 = vmatpush1.msra.mxu0 0.0
  %97 = vmatprep.subr.mxu0 0.0
  %98 = vmatpush1.msra.mxu0 0.0
  %99 = vmatprep.subr.mxu0 0.0
  %100 = vmatpush1.msra.mxu0 0.0
  %101 = vmatprep.subr.mxu0 0.0
  %102 = vmatpush1.msra.mxu0 0.0
  %103 = vmatprep.subr.mxu0 0.0
  %104 = vmatpush1.msra.mxu0 0.0
  %105 = vmatprep.subr.mxu0 0.0
  %106 = vmatpush1.msra.mxu0 0.0
  %107 = vmatprep.subr.mxu0 0.0
  %108 = vmatpush1.msra.mxu0 0.0
  %109 = vmatprep.subr.mxu0 0.0
  %110 = vmatpush1.msra.mxu0 0.0
  %111 = vmatprep.subr.mxu0 0.0
  %112 = vmatpush1.msra.mxu0 0.0
  %113 = vmatprep.subr.mxu0 0.0
  %114 = vmatpush1.msra.mxu0 0.0
  %115 = vmatprep.subr.mxu0 0.0
  %116 = vmatpush1.msra.mxu0 0.0
  %117 = vmatprep.subr.mxu0 0.0
  %118 = vmatpush1.msra.mxu0 0.0
  %119 = vmatprep.subr.mxu0 0.0
  %120 = vmatpush1.msra.mxu0 0.0
  %121 = vmatprep.subr.mxu0 0.0
  %122 = vmatpush1.msra.mxu0 0.0
  %123 = vmatprep.subr.mxu0 0.0
  %124 = vmatpush1.msra.mxu0 0.0
  %125 = vmatprep.subr.mxu0 0.0
  %126 = vmatpush1.msra.mxu0 0.0
  %127 = vmatprep.subr.mxu0 0.0
  %128 = vmatpush1.msra.mxu0 0.0
  %129 = vmatprep.subr.mxu0 0.0
  %130 = vmatpush1.msra.mxu0 0.0
  %131 = vmatprep.subr.mxu0 0.0
  %132 = vmatpush1.msra.mxu0 0.0
  %133 = vmatprep.subr.mxu0 0.0
  %134 = vmatpush1.msra.mxu0 0.0
  %135 = vmatprep.mubr.f32.mxu0 0.0
  %136 = vmatmul.mubr.f32.gmra.mrb[0].mxu0 %v48
  %v137 = vpop.f32.mrb[0].mxu0
  %v138 = vadd.f32 0.0, %v137
  %v139 = vpop.f32.mrb[0].mxu0
  %140 = vmatprep.mubr.f32.mxu0 0.0
  %141 = vmatmul.mubr.f32.gmra.mrb[0].mxu0 %v51
  %v142 = vpop.f32.mrb[0].mxu0
  %v143 = vadd.f32 0.0, %v142
  %v144 = vpop.f32.mrb[0].mxu0
  %145 = vmatprep.mubr.f32.mxu0 0.0
  %146 = vmatmul.mubr.f32.gmra.mrb[0].mxu0 %v54
  %v147 = vpop.f32.mrb[0].mxu0
  %v148 = vadd.f32 0.0, %v147
  %v149 = vpop.f32.mrb[0].mxu0
  %150 = vmatprep.mubr.f32.mxu0 0.0
  %151 = vmatmul.mubr.f32.gmra.mrb[0].mxu0 %v57
  %v152 = vpop.f32.mrb[0].mxu0
  %v153 = vadd.f32 0.0, %v152
  %v154 = vpop.f32.mrb[0].mxu0
  %155 = vmatprep.mubr.f32.mxu0 0.0
  %156 = vmatmul.mubr.f32.gmra.mrb[0].mxu0 %v60
  %v157 = vpop.f32.mrb[0].mxu0
  %v158 = vadd.f32 0.0, %v157
  %v159 = vpop.f32.mrb[0].mxu0
  %160 = vmatprep.mubr.f32.mxu0 0.0
  %161 = vmatmul.mubr.f32.gmra.mrb[0].mxu0 %v63
  %v162 = vpop.f32.mrb[0].mxu0
  %v163 = vadd.f32 0.0, %v162
  %v164 = vpop.f32.mrb[0].mxu0
  %165 = vmatprep.mubr.f32.mxu0 0.0
  %166 = vmatmul.mubr.f32.gmra.mrb[0].mxu0 %v66
  %v167 = vpop.f32.mrb[0].mxu0
  %v168 = vadd.f32 0.0, %v167
  %v169 = vpop.f32.mrb[0].mxu0
  %170 = vmatprep.mubr.f32.mxu0 0.0
  %171 = vmatmul.mubr.f32.gmra.mrb[0].mxu0 %v69
  %v172 = vpop.f32.mrb[0].mxu0
  %v173 = vadd.f32 0.0, %v172
  %v174 = vpop.f32.mrb[0].mxu0
  %175 = vdwg.mxu0
  %v176 = vtanh.pop %v138
  %v177 = vtanh.pop %v143
  %v178 = vtanh.pop %v148
  %v179 = vtanh.pop %v153
  %v180 = vtanh.pop %v158
  %v181 = vtanh.pop %v163
  %v182 = vtanh.pop %v168
  %v183 = vtanh.pop %v173
  %vm184 = vcmask 523264
  %v186 = vsel %vm184, %v26, 0
  %v189 = vsel %vm184, %v27, 0
  %v192 = vsel %vm184, %v28, 0
  %v195 = vsel %vm184, %v29, 0
  %v198 = vsel %vm184, %v30, 0
  %v201 = vsel %vm184, %v31, 0
  %v204 = vsel %vm184, %v32, 0
  %v207 = vsel %vm184, %v33, 0
  %209 = vmatprep.subr.mxu0 0.0
  %210 = vmatpush1.msra.mxu0 %v176
  %211 = vmatprep.subr.mxu0 0.0
  %212 = vmatpush1.msra.mxu0 %v177
  %213 = vmatprep.subr.mxu0 0.0
  %214 = vmatpush1.msra.mxu0 %v178
  %215 = vmatprep.subr.mxu0 0.0
  %216 = vmatpush1.msra.mxu0 %v179
  %217 = vmatprep.subr.mxu0 0.0
  %218 = vmatpush1.msra.mxu0 %v180
  %219 = vmatprep.subr.mxu0 0.0
  %220 = vmatpush1.msra.mxu0 %v181
  %221 = vmatprep.subr.mxu0 0.0
  %222 = vmatpush1.msra.mxu0 %v182
  %223 = vmatprep.subr.mxu0 0.0
  %224 = vmatpush1.msra.mxu0 %v183
  %225 = vmatprep.subr.mxu0 0.0
  %226 = vmatpush1.msra.mxu0 0.0
  %227 = vmatprep.subr.mxu0 0.0
  %228 = vmatpush1.msra.mxu0 0.0
  %229 = vmatprep.subr.mxu0 0.0
  %230 = vmatpush1.msra.mxu0 0.0
  %231 = vmatprep.subr.mxu0 0.0
  %232 = vmatpush1.msra.mxu0 0.0
  %233 = vmatprep.subr.mxu0 0.0
  %234 = vmatpush1.msra.mxu0 0.0
  %235 = vmatprep.subr.mxu0 0.0
  %236 = vmatpush1.msra.mxu0 0.0
  %237 = vmatprep.subr.mxu0 0.0
  %238 = vmatpush1.msra.mxu0 0.0
  %239 = vmatprep.subr.mxu0 0.0
  %240 = vmatpush1.msra.mxu0 0.0
  %241 = vmatprep.subr.mxu0 0.0
  %242 = vmatpush1.msra.mxu0 0.0
  %243 = vmatprep.subr.mxu0 0.0
  %244 = vmatpush1.msra.mxu0 0.0
  %245 = vmatprep.subr.mxu0 0.0
  %246 = vmatpush1.msra.mxu0 0.0
  %247 = vmatprep.subr.mxu0 0.0
  %248 = vmatpush1.msra.mxu0 0.0
  %249 = vmatprep.subr.mxu0 0.0
  %250 = vmatpush1.msra.mxu0 0.0
  %251 = vmatprep.subr.mxu0 0.0
  %252 = vmatpush1.msra.mxu0 0.0
  %253 = vmatprep.subr.mxu0 0.0
  %254 = vmatpush1.msra.mxu0 0.0
  %255 = vmatprep.subr.mxu0 0.0
  %256 = vmatpush1.msra.mxu0 0.0
  %257 = vmatprep.subr.mxu0 0.0
  %258 = vmatpush1.msra.mxu0 0.0
  %259 = vmatprep.subr.mxu0 0.0
  %260 = vmatpush1.msra.mxu0 0.0
  %261 = vmatprep.subr.mxu0 0.0
  %262 = vmatpush1.msra.mxu0 0.0
  %263 = vmatprep.subr.mxu0 0.0
  %264 = vmatpush1.msra.mxu0 0.0
  %265 = vmatprep.subr.mxu0 0.0
  %266 = vmatpush1.msra.mxu0 0.0
  %267 = vmatprep.subr.mxu0 0.0
  %268 = vmatpush1.msra.mxu0 0.0
  %269 = vmatprep.subr.mxu0 0.0
  %270 = vmatpush1.msra.mxu0 0.0
  %271 = vmatprep.subr.mxu0 0.0
  %272 = vmatpush1.msra.mxu0 0.0
  %273 = vmatprep.mubr.f32.mxu0 0.0
  %274 = vmatmul.mubr.f32.gmra.mrb[0].mxu0 %v186
  %v275 = vpop.f32.mrb[0].mxu0
  %v276 = vadd.f32 0.0, %v275
  %v277 = vpop.f32.mrb[0].mxu0
  %278 = vmatprep.mubr.f32.mxu0 0.0
  %279 = vmatmul.mubr.f32.gmra.mrb[0].mxu0 %v189
  %v280 = vpop.f32.mrb[0].mxu0
  %v281 = vadd.f32 0.0, %v280
  %v282 = vpop.f32.mrb[0].mxu0
  %283 = vmatprep.mubr.f32.mxu0 0.0
  %284 = vmatmul.mubr.f32.gmra.mrb[0].mxu0 %v192
  %v285 = vpop.f32.mrb[0].mxu0
  %v286 = vadd.f32 0.0, %v285
  %v287 = vpop.f32.mrb[0].mxu0
  %288 = vmatprep.mubr.f32.mxu0 0.0
  %289 = vmatmul.mubr.f32.gmra.mrb[0].mxu0 %v195
  %v290 = vpop.f32.mrb[0].mxu0
  %v291 = vadd.f32 0.0, %v290
  %v292 = vpop.f32.mrb[0].mxu0
  %293 = vmatprep.mubr.f32.mxu0 0.0
  %294 = vmatmul.mubr.f32.gmra.mrb[0].mxu0 %v198
  %v295 = vpop.f32.mrb[0].mxu0
  %v296 = vadd.f32 0.0, %v295
  %v297 = vpop.f32.mrb[0].mxu0
  %298 = vmatprep.mubr.f32.mxu0 0.0
  %299 = vmatmul.mubr.f32.gmra.mrb[0].mxu0 %v201
  %v300 = vpop.f32.mrb[0].mxu0
  %v301 = vadd.f32 0.0, %v300
  %v302 = vpop.f32.mrb[0].mxu0
  %303 = vmatprep.mubr.f32.mxu0 0.0
  %304 = vmatmul.mubr.f32.gmra.mrb[0].mxu0 %v204
  %v305 = vpop.f32.mrb[0].mxu0
  %v306 = vadd.f32 0.0, %v305
  %v307 = vpop.f32.mrb[0].mxu0
  %308 = vmatprep.mubr.f32.mxu0 0.0
  %309 = vmatmul.mubr.f32.gmra.mrb[0].mxu0 %v207
  %v310 = vpop.f32.mrb[0].mxu0
  %v311 = vadd.f32 0.0, %v310
  %v312 = vpop.f32.mrb[0].mxu0
  %313 = vdwg.mxu0
  %314 = vmatprep.subr.mxu0 0.0
  %315 = vmatpush1.msra.mxu0 %v276
  %316 = vmatprep.subr.mxu0 0.0
  %317 = vmatpush1.msra.mxu0 %v281
  %318 = vmatprep.subr.mxu0 0.0
  %319 = vmatpush1.msra.mxu0 %v286
  %320 = vmatprep.subr.mxu0 0.0
  %321 = vmatpush1.msra.mxu0 %v291
  %322 = vmatprep.subr.mxu0 0.0
  %323 = vmatpush1.msra.mxu0 %v296
  %324 = vmatprep.subr.mxu0 0.0
  %325 = vmatpush1.msra.mxu0 %v301
  %326 = vmatprep.subr.mxu0 0.0
  %327 = vmatpush1.msra.mxu0 %v306
  %328 = vmatprep.subr.mxu0 0.0
  %329 = vmatpush1.msra.mxu0 %v311
  %330 = vmatprep.subr.mxu0 0.0
  %331 = vmatpush1.msra.mxu0 0.0
  %332 = vmatprep.subr.mxu0 0.0
  %333 = vmatpush1.msra.mxu0 0.0
  %334 = vmatprep.subr.mxu0 0.0
  %335 = vmatpush1.msra.mxu0 0.0
  %336 = vmatprep.subr.mxu0 0.0
  %337 = vmatpush1.msra.mxu0 0.0
  %338 = vmatprep.subr.mxu0 0.0
  %339 = vmatpush1.msra.mxu0 0.0
  %340 = vmatprep.subr.mxu0 0.0
  %341 = vmatpush1.msra.mxu0 0.0
  %342 = vmatprep.subr.mxu0 0.0
  %343 = vmatpush1.msra.mxu0 0.0
  %344 = vmatprep.subr.mxu0 0.0
  %345 = vmatpush1.msra.mxu0 0.0
  %346 = vmatprep.subr.mxu0 0.0
  %347 = vmatpush1.msra.mxu0 0.0
  %348 = vmatprep.subr.mxu0 0.0
  %349 = vmatpush1.msra.mxu0 0.0
  %350 = vmatprep.subr.mxu0 0.0
  %351 = vmatpush1.msra.mxu0 0.0
  %352 = vmatprep.subr.mxu0 0.0
  %353 = vmatpush1.msra.mxu0 0.0
  %354 = vmatprep.subr.mxu0 0.0
  %355 = vmatpush1.msra.mxu0 0.0
  %356 = vmatprep.subr.mxu0 0.0
  %357 = vmatpush1.msra.mxu0 0.0
  %358 = vmatprep.subr.mxu0 0.0
  %359 = vmatpush1.msra.mxu0 0.0
  %360 = vmatprep.subr.mxu0 0.0
  %361 = vmatpush1.msra.mxu0 0.0
  %362 = vmatprep.subr.mxu0 0.0
  %363 = vmatpush1.msra.mxu0 0.0
  %364 = vmatprep.subr.mxu0 0.0
  %365 = vmatpush1.msra.mxu0 0.0
  %366 = vmatprep.subr.mxu0 0.0
  %367 = vmatpush1.msra.mxu0 0.0
  %368 = vmatprep.subr.mxu0 0.0
  %369 = vmatpush1.msra.mxu0 0.0
  %370 = vmatprep.subr.mxu0 0.0
  %371 = vmatpush1.msra.mxu0 0.0
  %372 = vmatprep.subr.mxu0 0.0
  %373 = vmatpush1.msra.mxu0 0.0
  %374 = vmatprep.subr.mxu0 0.0
  %375 = vmatpush1.msra.mxu0 0.0
  %376 = vmatprep.subr.mxu0 0.0
  %377 = vmatpush1.msra.mxu0 0.0
  %378 = vmatprep.mubr.f32.mxu0 0.0
  %379 = vmatmul.mubr.f32.gmra.mrb[0].mxu0 %v186
  %v380 = vpop.f32.mrb[0].mxu0
  %v381 = vadd.f32 0.0, %v380
  %v382 = vpop.f32.mrb[0].mxu0
  %383 = vmatprep.mubr.f32.mxu0 0.0
  %384 = vmatmul.mubr.f32.gmra.mrb[0].mxu0 %v189
  %v385 = vpop.f32.mrb[0].mxu0
  %v386 = vadd.f32 0.0, %v385
  %v387 = vpop.f32.mrb[0].mxu0
  %388 = vmatprep.mubr.f32.mxu0 0.0
  %389 = vmatmul.mubr.f32.gmra.mrb[0].mxu0 %v192
  %v390 = vpop.f32.mrb[0].mxu0
  %v391 = vadd.f32 0.0, %v390
  %v392 = vpop.f32.mrb[0].mxu0
  %393 = vmatprep.mubr.f32.mxu0 0.0
  %394 = vmatmul.mubr.f32.gmra.mrb[0].mxu0 %v195
  %v395 = vpop.f32.mrb[0].mxu0
  %v396 = vadd.f32 0.0, %v395
  %v397 = vpop.f32.mrb[0].mxu0
  %398 = vmatprep.mubr.f32.mxu0 0.0
  %399 = vmatmul.mubr.f32.gmra.mrb[0].mxu0 %v198
  %v400 = vpop.f32.mrb[0].mxu0
  %v401 = vadd.f32 0.0, %v400
  %v402 = vpop.f32.mrb[0].mxu0
  %403 = vmatprep.mubr.f32.mxu0 0.0
  %404 = vmatmul.mubr.f32.gmra.mrb[0].mxu0 %v201
  %v405 = vpop.f32.mrb[0].mxu0
  %v406 = vadd.f32 0.0, %v405
  %v407 = vpop.f32.mrb[0].mxu0
  %408 = vmatprep.mubr.f32.mxu0 0.0
  %409 = vmatmul.mubr.f32.gmra.mrb[0].mxu0 %v204
  %v410 = vpop.f32.mrb[0].mxu0
  %v411 = vadd.f32 0.0, %v410
  %v412 = vpop.f32.mrb[0].mxu0
  %413 = vmatprep.mubr.f32.mxu0 0.0
  %414 = vmatmul.mubr.f32.gmra.mrb[0].mxu0 %v207
  %v415 = vpop.f32.mrb[0].mxu0
  %v416 = vadd.f32 0.0, %v415
  %v417 = vpop.f32.mrb[0].mxu0
  %418 = vdwg.mxu0
  %v419 = vld [vmem:[%s3] sm:$0xff]
  %v420 = vld [vmem:[%s3 + $0x8] sm:$0xff]
  %vm421 = vcmask 130048
  %v423 = vsel %vm421, %v276, 0
  %v426 = vsel %vm421, %v281, 0
  %v429 = vsel %vm421, %v286, 0
  %v432 = vsel %vm421, %v291, 0
  %v435 = vsel %vm421, %v296, 0
  %v438 = vsel %vm421, %v301, 0
  %v441 = vsel %vm421, %v306, 0
  %v444 = vsel %vm421, %v311, 0
  %446 = vmatprep.subr.mxu0 0.0
  %447 = vmatpush1.msra.mxu0 %v419
  %448 = vmatprep.subr.mxu0 0.0
  %449 = vmatpush1.msra.mxu0 %v420
  %450 = vmatprep.subr.mxu0 0.0
  %451 = vmatpush1.msra.mxu0 0.0
  %452 = vmatprep.subr.mxu0 0.0
  %453 = vmatpush1.msra.mxu0 0.0
  %454 = vmatprep.subr.mxu0 0.0
  %455 = vmatpush1.msra.mxu0 0.0
  %456 = vmatprep.subr.mxu0 0.0
  %457 = vmatpush1.msra.mxu0 0.0
  %458 = vmatprep.subr.mxu0 0.0
  %459 = vmatpush1.msra.mxu0 0.0
  %460 = vmatprep.subr.mxu0 0.0
  %461 = vmatpush1.msra.mxu0 0.0
  %462 = vmatprep.subr.mxu0 0.0
  %463 = vmatpush1.msra.mxu0 0.0
  %464 = vmatprep.subr.mxu0 0.0
  %465 = vmatpush1.msra.mxu0 0.0
  %466 = vmatprep.subr.mxu0 0.0
  %467 = vmatpush1.msra.mxu0 0.0
  %468 = vmatprep.subr.mxu0 0.0
  %469 = vmatpush1.msra.mxu0 0.0
  %470 = vmatprep.subr.mxu0 0.0
  %471 = vmatpush1.msra.mxu0 0.0
  %472 = vmatprep.subr.mxu0 0.0
  %473 = vmatpush1.msra.mxu0 0.0
  %474 = vmatprep.subr.mxu0 0.0
  %475 = vmatpush1.msra.mxu0 0.0
  %476 = vmatprep.subr.mxu0 0.0
  %477 = vmatpush1.msra.mxu0 0.0
  %478 = vmatprep.subr.mxu0 0.0
  %479 = vmatpush1.msra.mxu0 0.0
  %480 = vmatprep.subr.mxu0 0.0
  %481 = vmatpush1.msra.mxu0 0.0
  %482 = vmatprep.subr.mxu0 0.0
  %483 = vmatpush1.msra.mxu0 0.0
  %484 = vmatprep.subr.mxu0 0.0
  %485 = vmatpush1.msra.mxu0 0.0
  %486 = vmatprep.subr.mxu0 0.0
  %487 = vmatpush1.msra.mxu0 0.0
  %488 = vmatprep.subr.mxu0 0.0
  %489 = vmatpush1.msra.mxu0 0.0
  %490 = vmatprep.subr.mxu0 0.0
  %491 = vmatpush1.msra.mxu0 0.0
  %492 = vmatprep.subr.mxu0 0.0
  %493 = vmatpush1.msra.mxu0 0.0
  %494 = vmatprep.subr.mxu0 0.0
  %495 = vmatpush1.msra.mxu0 0.0
  %496 = vmatprep.subr.mxu0 0.0
  %497 = vmatpush1.msra.mxu0 0.0
  %498 = vmatprep.subr.mxu0 0.0
  %499 = vmatpush1.msra.mxu0 0.0
  %500 = vmatprep.subr.mxu0 0.0
  %501 = vmatpush1.msra.mxu0 0.0
  %502 = vmatprep.subr.mxu0 0.0
  %503 = vmatpush1.msra.mxu0 0.0
  %504 = vmatprep.subr.mxu0 0.0
  %505 = vmatpush1.msra.mxu0 0.0
  %506 = vmatprep.subr.mxu0 0.0
  %507 = vmatpush1.msra.mxu0 0.0
  %508 = vmatprep.subr.mxu0 0.0
  %509 = vmatpush1.msra.mxu0 0.0
  %510 = vmatprep.mubr.f32.mxu0 0.0
  %511 = vmatmul.mubr.f32.gmra.mrb[0].mxu0 %v423
  %v512 = vpop.f32.mrb[0].mxu0
  %v513 = vadd.f32 0.0, %v512
  %v514 = vpop.f32.mrb[0].mxu0
  %515 = vmatprep.mubr.f32.mxu0 0.0
  %516 = vmatmul.mubr.f32.gmra.mrb[0].mxu0 %v426
  %v517 = vpop.f32.mrb[0].mxu0
  %v518 = vadd.f32 0.0, %v517
  %v519 = vpop.f32.mrb[0].mxu0
  %520 = vmatprep.mubr.f32.mxu0 0.0
  %521 = vmatmul.mubr.f32.gmra.mrb[0].mxu0 %v429
  %v522 = vpop.f32.mrb[0].mxu0
  %v523 = vadd.f32 0.0, %v522
  %v524 = vpop.f32.mrb[0].mxu0
  %525 = vmatprep.mubr.f32.mxu0 0.0
  %526 = vmatmul.mubr.f32.gmra.mrb[0].mxu0 %v432
  %v527 = vpop.f32.mrb[0].mxu0
  %v528 = vadd.f32 0.0, %v527
  %v529 = vpop.f32.mrb[0].mxu0
  %530 = vmatprep.mubr.f32.mxu0 0.0
  %531 = vmatmul.mubr.f32.gmra.mrb[0].mxu0 %v435
  %v532 = vpop.f32.mrb[0].mxu0
  %v533 = vadd.f32 0.0, %v532
  %v534 = vpop.f32.mrb[0].mxu0
  %535 = vmatprep.mubr.f32.mxu0 0.0
  %536 = vmatmul.mubr.f32.gmra.mrb[0].mxu0 %v438
  %v537 = vpop.f32.mrb[0].mxu0
  %v538 = vadd.f32 0.0, %v537
  %v539 = vpop.f32.mrb[0].mxu0
  %540 = vmatprep.mubr.f32.mxu0 0.0
  %541 = vmatmul.mubr.f32.gmra.mrb[0].mxu0 %v441
  %v542 = vpop.f32.mrb[0].mxu0
  %v543 = vadd.f32 0.0, %v542
  %v544 = vpop.f32.mrb[0].mxu0
  %545 = vmatprep.mubr.f32.mxu0 0.0
  %546 = vmatmul.mubr.f32.gmra.mrb[0].mxu0 %v444
  %v547 = vpop.f32.mrb[0].mxu0
  %v548 = vadd.f32 0.0, %v547
  %v549 = vpop.f32.mrb[0].mxu0
  %550 = vdwg.mxu0
  %v551 = vtanh.pop %v513
  %v552 = vtanh.pop %v518
  %v553 = vtanh.pop %v523
  %v554 = vtanh.pop %v528
  %v555 = vtanh.pop %v533
  %v556 = vtanh.pop %v538
  %v557 = vtanh.pop %v543
  %v558 = vtanh.pop %v548
  %559 = vmatprep.subr.mxu0 0.0
  %560 = vmatpush1.msra.mxu0 %v551
  %561 = vmatprep.subr.mxu0 0.0
  %562 = vmatpush1.msra.mxu0 %v552
  %563 = vmatprep.subr.mxu0 0.0
  %564 = vmatpush1.msra.mxu0 %v553
  %565 = vmatprep.subr.mxu0 0.0
  %566 = vmatpush1.msra.mxu0 %v554
  %567 = vmatprep.subr.mxu0 0.0
  %568 = vmatpush1.msra.mxu0 %v555
  %569 = vmatprep.subr.mxu0 0.0
  %570 = vmatpush1.msra.mxu0 %v556
  %571 = vmatprep.subr.mxu0 0.0
  %572 = vmatpush1.msra.mxu0 %v557
  %573 = vmatprep.subr.mxu0 0.0
  %574 = vmatpush1.msra.mxu0 %v558
  %575 = vmatprep.subr.mxu0 0.0
  %576 = vmatpush1.msra.mxu0 0.0
  %577 = vmatprep.subr.mxu0 0.0
  %578 = vmatpush1.msra.mxu0 0.0
  %579 = vmatprep.subr.mxu0 0.0
  %580 = vmatpush1.msra.mxu0 0.0
  %581 = vmatprep.subr.mxu0 0.0
  %582 = vmatpush1.msra.mxu0 0.0
  %583 = vmatprep.subr.mxu0 0.0
  %584 = vmatpush1.msra.mxu0 0.0
  %585 = vmatprep.subr.mxu0 0.0
  %586 = vmatpush1.msra.mxu0 0.0
  %587 = vmatprep.subr.mxu0 0.0
  %588 = vmatpush1.msra.mxu0 0.0
  %589 = vmatprep.subr.mxu0 0.0
  %590 = vmatpush1.msra.mxu0 0.0
  %591 = vmatprep.subr.mxu0 0.0
  %592 = vmatpush1.msra.mxu0 0.0
  %593 = vmatprep.subr.mxu0 0.0
  %594 = vmatpush1.msra.mxu0 0.0
  %595 = vmatprep.subr.mxu0 0.0
  %596 = vmatpush1.msra.mxu0 0.0
  %597 = vmatprep.subr.mxu0 0.0
  %598 = vmatpush1.msra.mxu0 0.0
  %599 = vmatprep.subr.mxu0 0.0
  %600 = vmatpush1.msra.mxu0 0.0
  %601 = vmatprep.subr.mxu0 0.0
  %602 = vmatpush1.msra.mxu0 0.0
  %603 = vmatprep.subr.mxu0 0.0
  %604 = vmatpush1.msra.mxu0 0.0
  %605 = vmatprep.subr.mxu0 0.0
  %606 = vmatpush1.msra.mxu0 0.0
  %607 = vmatprep.subr.mxu0 0.0
  %608 = vmatpush1.msra.mxu0 0.0
  %609 = vmatprep.subr.mxu0 0.0
  %610 = vmatpush1.msra.mxu0 0.0
  %611 = vmatprep.subr.mxu0 0.0
  %612 = vmatpush1.msra.mxu0 0.0
  %613 = vmatprep.subr.mxu0 0.0
  %614 = vmatpush1.msra.mxu0 0.0
  %615 = vmatprep.subr.mxu0 0.0
  %616 = vmatpush1.msra.mxu0 0.0
  %617 = vmatprep.subr.mxu0 0.0
  %618 = vmatpush1.msra.mxu0 0.0
  %619 = vmatprep.subr.mxu0 0.0
  %620 = vmatpush1.msra.mxu0 0.0
  %621 = vmatprep.subr.mxu0 0.0
  %622 = vmatpush1.msra.mxu0 0.0
  %623 = vmatprep.mubr.f32.mxu0 0.0
  %624 = vmatmul.mubr.f32.gmra.mrb[0].mxu0 %v186
  %v625 = vpop.f32.mrb[0].mxu0
  %v626 = vadd.f32 0.0, %v625
  %v627 = vpop.f32.mrb[0].mxu0
  %628 = vmatprep.mubr.f32.mxu0 0.0
  %629 = vmatmul.mubr.f32.gmra.mrb[0].mxu0 %v189
  %v630 = vpop.f32.mrb[0].mxu0
  %v631 = vadd.f32 0.0, %v630
  %v632 = vpop.f32.mrb[0].mxu0
  %633 = vmatprep.mubr.f32.mxu0 0.0
  %634 = vmatmul.mubr.f32.gmra.mrb[0].mxu0 %v192
  %v635 = vpop.f32.mrb[0].mxu0
  %v636 = vadd.f32 0.0, %v635
  %v637 = vpop.f32.mrb[0].mxu0
  %638 = vmatprep.mubr.f32.mxu0 0.0
  %639 = vmatmul.mubr.f32.gmra.mrb[0].mxu0 %v195
  %v640 = vpop.f32.mrb[0].mxu0
  %v641 = vadd.f32 0.0, %v640
  %v642 = vpop.f32.mrb[0].mxu0
  %643 = vmatprep.mubr.f32.mxu0 0.0
  %644 = vmatmul.mubr.f32.gmra.mrb[0].mxu0 %v198
  %v645 = vpop.f32.mrb[0].mxu0
  %v646 = vadd.f32 0.0, %v645
  %v647 = vpop.f32.mrb[0].mxu0
  %648 = vmatprep.mubr.f32.mxu0 0.0
  %649 = vmatmul.mubr.f32.gmra.mrb[0].mxu0 %v201
  %v650 = vpop.f32.mrb[0].mxu0
  %v651 = vadd.f32 0.0, %v650
  %v652 = vpop.f32.mrb[0].mxu0
  %653 = vmatprep.mubr.f32.mxu0 0.0
  %654 = vmatmul.mubr.f32.gmra.mrb[0].mxu0 %v204
  %v655 = vpop.f32.mrb[0].mxu0
  %v656 = vadd.f32 0.0, %v655
  %v657 = vpop.f32.mrb[0].mxu0
  %658 = vmatprep.mubr.f32.mxu0 0.0
  %659 = vmatmul.mubr.f32.gmra.mrb[0].mxu0 %v207
  %v660 = vpop.f32.mrb[0].mxu0
  %v661 = vadd.f32 0.0, %v660
  %v662 = vpop.f32.mrb[0].mxu0
  %663 = vdwg.mxu0
  %664 = vmatprep.subr.mxu0 0.0
  %665 = vmatpush1.msra.mxu0 %v626
  %666 = vmatprep.subr.mxu0 0.0
  %667 = vmatpush1.msra.mxu0 %v631
  %668 = vmatprep.subr.mxu0 0.0
  %669 = vmatpush1.msra.mxu0 %v636
  %670 = vmatprep.subr.mxu0 0.0
  %671 = vmatpush1.msra.mxu0 %v641
  %672 = vmatprep.subr.mxu0 0.0
  %673 = vmatpush1.msra.mxu0 %v646
  %674 = vmatprep.subr.mxu0 0.0
  %675 = vmatpush1.msra.mxu0 %v651
  %676 = vmatprep.subr.mxu0 0.0
  %677 = vmatpush1.msra.mxu0 %v656
  %678 = vmatprep.subr.mxu0 0.0
  %679 = vmatpush1.msra.mxu0 %v661
  %680 = vmatprep.subr.mxu0 0.0
  %681 = vmatpush1.msra.mxu0 0.0
  %682 = vmatprep.subr.mxu0 0.0
  %683 = vmatpush1.msra.mxu0 0.0
  %684 = vmatprep.subr.mxu0 0.0
  %685 = vmatpush1.msra.mxu0 0.0
  %686 = vmatprep.subr.mxu0 0.0
  %687 = vmatpush1.msra.mxu0 0.0
  %688 = vmatprep.subr.mxu0 0.0
  %689 = vmatpush1.msra.mxu0 0.0
  %690 = vmatprep.subr.mxu0 0.0
  %691 = vmatpush1.msra.mxu0 0.0
  %692 = vmatprep.subr.mxu0 0.0
  %693 = vmatpush1.msra.mxu0 0.0
  %694 = vmatprep.subr.mxu0 0.0
  %695 = vmatpush1.msra.mxu0 0.0
  %696 = vmatprep.subr.mxu0 0.0
  %697 = vmatpush1.msra.mxu0 0.0
  %698 = vmatprep.subr.mxu0 0.0
  %699 = vmatpush1.msra.mxu0 0.0
  %700 = vmatprep.subr.mxu0 0.0
  %701 = vmatpush1.msra.mxu0 0.0
  %702 = vmatprep.subr.mxu0 0.0
  %703 = vmatpush1.msra.mxu0 0.0
  %704 = vmatprep.subr.mxu0 0.0
  %705 = vmatpush1.msra.mxu0 0.0
  %706 = vmatprep.subr.mxu0 0.0
  %707 = vmatpush1.msra.mxu0 0.0
  %708 = vmatprep.subr.mxu0 0.0
  %709 = vmatpush1.msra.mxu0 0.0
  %710 = vmatprep.subr.mxu0 0.0
  %711 = vmatpush1.msra.mxu0 0.0
  %712 = vmatprep.subr.mxu0 0.0
  %713 = vmatpush1.msra.mxu0 0.0
  %714 = vmatprep.subr.mxu0 0.0
  %715 = vmatpush1.msra.mxu0 0.0
  %716 = vmatprep.subr.mxu0 0.0
  %717 = vmatpush1.msra.mxu0 0.0
  %718 = vmatprep.subr.mxu0 0.0
  %719 = vmatpush1.msra.mxu0 0.0
  %720 = vmatprep.subr.mxu0 0.0
  %721 = vmatpush1.msra.mxu0 0.0
  %722 = vmatprep.subr.mxu0 0.0
  %723 = vmatpush1.msra.mxu0 0.0
  %724 = vmatprep.subr.mxu0 0.0
  %725 = vmatpush1.msra.mxu0 0.0
  %726 = vmatprep.subr.mxu0 0.0
  %727 = vmatpush1.msra.mxu0 0.0
  %728 = vmatprep.mubr.f32.mxu0 0.0
  %729 = vmatmul.mubr.f32.gmra.mrb[0].mxu0 %v186
  %v730 = vpop.f32.mrb[0].mxu0
  %v731 = vadd.f32 0.0, %v730
  %v732 = vpop.f32.mrb[0].mxu0
  %733 = vmatprep.mubr.f32.mxu0 0.0
  %734 = vmatmul.mubr.f32.gmra.mrb[0].mxu0 %v189
  %v735 = vpop.f32.mrb[0].mxu0
  %v736 = vadd.f32 0.0, %v735
  %v737 = vpop.f32.mrb[0].mxu0
  %738 = vmatprep.mubr.f32.mxu0 0.0
  %739 = vmatmul.mubr.f32.gmra.mrb[0].mxu0 %v192
  %v740 = vpop.f32.mrb[0].mxu0
  %v741 = vadd.f32 0.0, %v740
  %v742 = vpop.f32.mrb[0].mxu0
  %743 = vmatprep.mubr.f32.mxu0 0.0
  %744 = vmatmul.mubr.f32.gmra.mrb[0].mxu0 %v195
  %v745 = vpop.f32.mrb[0].mxu0
  %v746 = vadd.f32 0.0, %v745
  %v747 = vpop.f32.mrb[0].mxu0
  %748 = vmatprep.mubr.f32.mxu0 0.0
  %749 = vmatmul.mubr.f32.gmra.mrb[0].mxu0 %v198
  %v750 = vpop.f32.mrb[0].mxu0
  %v751 = vadd.f32 0.0, %v750
  %v752 = vpop.f32.mrb[0].mxu0
  %753 = vmatprep.mubr.f32.mxu0 0.0
  %754 = vmatmul.mubr.f32.gmra.mrb[0].mxu0 %v201
  %v755 = vpop.f32.mrb[0].mxu0
  %v756 = vadd.f32 0.0, %v755
  %v757 = vpop.f32.mrb[0].mxu0
  %758 = vmatprep.mubr.f32.mxu0 0.0
  %759 = vmatmul.mubr.f32.gmra.mrb[0].mxu0 %v204
  %v760 = vpop.f32.mrb[0].mxu0
  %v761 = vadd.f32 0.0, %v760
  %v762 = vpop.f32.mrb[0].mxu0
  %763 = vmatprep.mubr.f32.mxu0 0.0
  %764 = vmatmul.mubr.f32.gmra.mrb[0].mxu0 %v207
  %v765 = vpop.f32.mrb[0].mxu0
  %v766 = vadd.f32 0.0, %v765
  %v767 = vpop.f32.mrb[0].mxu0
  %768 = vdwg.mxu0
  %v769 = vld [vmem:[%s4] sm:$0xff]
  %v770 = vld [vmem:[%s4 + $0x8] sm:$0xff]
  %v772 = vsel %vm421, %v626, 0
  %v775 = vsel %vm421, %v631, 0
  %v778 = vsel %vm421, %v636, 0
  %v781 = vsel %vm421, %v641, 0
  %v784 = vsel %vm421, %v646, 0
  %v787 = vsel %vm421, %v651, 0
  %v790 = vsel %vm421, %v656, 0
  %v793 = vsel %vm421, %v661, 0
  %795 = vmatprep.subr.mxu0 0.0
  %796 = vmatpush1.msra.mxu0 %v769
  %797 = vmatprep.subr.mxu0 0.0
  %798 = vmatpush1.msra.mxu0 %v770
  %799 = vmatprep.subr.mxu0 0.0
  %800 = vmatpush1.msra.mxu0 0.0
  %801 = vmatprep.subr.mxu0 0.0
  %802 = vmatpush1.msra.mxu0 0.0
  %803 = vmatprep.subr.mxu0 0.0
  %804 = vmatpush1.msra.mxu0 0.0
  %805 = vmatprep.subr.mxu0 0.0
  %806 = vmatpush1.msra.mxu0 0.0
  %807 = vmatprep.subr.mxu0 0.0
  %808 = vmatpush1.msra.mxu0 0.0
  %809 = vmatprep.subr.mxu0 0.0
  %810 = vmatpush1.msra.mxu0 0.0
  %811 = vmatprep.subr.mxu0 0.0
  %812 = vmatpush1.msra.mxu0 0.0
  %813 = vmatprep.subr.mxu0 0.0
  %814 = vmatpush1.msra.mxu0 0.0
  %815 = vmatprep.subr.mxu0 0.0
  %816 = vmatpush1.msra.mxu0 0.0
  %817 = vmatprep.subr.mxu0 0.0
  %818 = vmatpush1.msra.mxu0 0.0
  %819 = vmatprep.subr.mxu0 0.0
  %820 = vmatpush1.msra.mxu0 0.0
  %821 = vmatprep.subr.mxu0 0.0
  %822 = vmatpush1.msra.mxu0 0.0
  %823 = vmatprep.subr.mxu0 0.0
  %824 = vmatpush1.msra.mxu0 0.0
  %825 = vmatprep.subr.mxu0 0.0
  %826 = vmatpush1.msra.mxu0 0.0
  %827 = vmatprep.subr.mxu0 0.0
  %828 = vmatpush1.msra.mxu0 0.0
  %829 = vmatprep.subr.mxu0 0.0
  %830 = vmatpush1.msra.mxu0 0.0
  %831 = vmatprep.subr.mxu0 0.0
  %832 = vmatpush1.msra.mxu0 0.0
  %833 = vmatprep.subr.mxu0 0.0
  %834 = vmatpush1.msra.mxu0 0.0
  %835 = vmatprep.subr.mxu0 0.0
  %836 = vmatpush1.msra.mxu0 0.0
  %837 = vmatprep.subr.mxu0 0.0
  %838 = vmatpush1.msra.mxu0 0.0
  %839 = vmatprep.subr.mxu0 0.0
  %840 = vmatpush1.msra.mxu0 0.0
  %841 = vmatprep.subr.mxu0 0.0
  %842 = vmatpush1.msra.mxu0 0.0
  %843 = vmatprep.subr.mxu0 0.0
  %844 = vmatpush1.msra.mxu0 0.0
  %845 = vmatprep.subr.mxu0 0.0
  %846 = vmatpush1.msra.mxu0 0.0
  %847 = vmatprep.subr.mxu0 0.0
  %848 = vmatpush1.msra.mxu0 0.0
  %849 = vmatprep.subr.mxu0 0.0
  %850 = vmatpush1.msra.mxu0 0.0
  %851 = vmatprep.subr.mxu0 0.0
  %852 = vmatpush1.msra.mxu0 0.0
  %853 = vmatprep.subr.mxu0 0.0
  %854 = vmatpush1.msra.mxu0 0.0
  %855 = vmatprep.subr.mxu0 0.0
  %856 = vmatpush1.msra.mxu0 0.0
  %857 = vmatprep.subr.mxu0 0.0
  %858 = vmatpush1.msra.mxu0 0.0
  %859 = vmatprep.mubr.f32.mxu0 0.0
  %860 = vmatmul.mubr.f32.gmra.mrb[0].mxu0 %v772
  %v861 = vpop.f32.mrb[0].mxu0
  %v862 = vadd.f32 0.0, %v861
  %v863 = vpop.f32.mrb[0].mxu0
  %864 = vmatprep.mubr.f32.mxu0 0.0
  %865 = vmatmul.mubr.f32.gmra.mrb[0].mxu0 %v775
  %v866 = vpop.f32.mrb[0].mxu0
  %v867 = vadd.f32 0.0, %v866
  %v868 = vpop.f32.mrb[0].mxu0
  %869 = vmatprep.mubr.f32.mxu0 0.0
  %870 = vmatmul.mubr.f32.gmra.mrb[0].mxu0 %v778
  %v871 = vpop.f32.mrb[0].mxu0
  %v872 = vadd.f32 0.0, %v871
  %v873 = vpop.f32.mrb[0].mxu0
  %874 = vmatprep.mubr.f32.mxu0 0.0
  %875 = vmatmul.mubr.f32.gmra.mrb[0].mxu0 %v781
  %v876 = vpop.f32.mrb[0].mxu0
  %v877 = vadd.f32 0.0, %v876
  %v878 = vpop.f32.mrb[0].mxu0
  %879 = vmatprep.mubr.f32.mxu0 0.0
  %880 = vmatmul.mubr.f32.gmra.mrb[0].mxu0 %v784
  %v881 = vpop.f32.mrb[0].mxu0
  %v882 = vadd.f32 0.0, %v881
  %v883 = vpop.f32.mrb[0].mxu0
  %884 = vmatprep.mubr.f32.mxu0 0.0
  %885 = vmatmul.mubr.f32.gmra.mrb[0].mxu0 %v787
  %v886 = vpop.f32.mrb[0].mxu0
  %v887 = vadd.f32 0.0, %v886
  %v888 = vpop.f32.mrb[0].mxu0
  %889 = vmatprep.mubr.f32.mxu0 0.0
  %890 = vmatmul.mubr.f32.gmra.mrb[0].mxu0 %v790
  %v891 = vpop.f32.mrb[0].mxu0
  %v892 = vadd.f32 0.0, %v891
  %v893 = vpop.f32.mrb[0].mxu0
  %894 = vmatprep.mubr.f32.mxu0 0.0
  %895 = vmatmul.mubr.f32.gmra.mrb[0].mxu0 %v793
  %v896 = vpop.f32.mrb[0].mxu0
  %v897 = vadd.f32 0.0, %v896
  %v898 = vpop.f32.mrb[0].mxu0
  %899 = vdwg.mxu0
  %v900 = vtanh.pop %v862
  %v901 = vtanh.pop %v867
  %v902 = vtanh.pop %v872
  %v903 = vtanh.pop %v877
  %v904 = vtanh.pop %v882
  %v905 = vtanh.pop %v887
  %v906 = vtanh.pop %v892
  %v907 = vtanh.pop %v897
  %908 = vmatprep.subr.mxu0 0.0
  %909 = vmatpush1.msra.mxu0 %v900
  %910 = vmatprep.subr.mxu0 0.0
  %911 = vmatpush1.msra.mxu0 %v901
  %912 = vmatprep.subr.mxu0 0.0
  %913 = vmatpush1.msra.mxu0 %v902
  %914 = vmatprep.subr.mxu0 0.0
  %915 = vmatpush1.msra.mxu0 %v903
  %916 = vmatprep.subr.mxu0 0.0
  %917 = vmatpush1.msra.mxu0 %v904
  %918 = vmatprep.subr.mxu0 0.0
  %919 = vmatpush1.msra.mxu0 %v905
  %920 = vmatprep.subr.mxu0 0.0
  %921 = vmatpush1.msra.mxu0 %v906
  %922 = vmatprep.subr.mxu0 0.0
  %923 = vmatpush1.msra.mxu0 %v907
  %924 = vmatprep.subr.mxu0 0.0
  %925 = vmatpush1.msra.mxu0 0.0
  %926 = vmatprep.subr.mxu0 0.0
  %927 = vmatpush1.msra.mxu0 0.0
  %928 = vmatprep.subr.mxu0 0.0
  %929 = vmatpush1.msra.mxu0 0.0
  %930 = vmatprep.subr.mxu0 0.0
  %931 = vmatpush1.msra.mxu0 0.0
  %932 = vmatprep.subr.mxu0 0.0
  %933 = vmatpush1.msra.mxu0 0.0
  %934 = vmatprep.subr.mxu0 0.0
  %935 = vmatpush1.msra.mxu0 0.0
  %936 = vmatprep.subr.mxu0 0.0
  %937 = vmatpush1.msra.mxu0 0.0
  %938 = vmatprep.subr.mxu0 0.0
  %939 = vmatpush1.msra.mxu0 0.0
  %940 = vmatprep.subr.mxu0 0.0
  %941 = vmatpush1.msra.mxu0 0.0
  %942 = vmatprep.subr.mxu0 0.0
  %943 = vmatpush1.msra.mxu0 0.0
  %944 = vmatprep.subr.mxu0 0.0
  %945 = vmatpush1.msra.mxu0 0.0
  %946 = vmatprep.subr.mxu0 0.0
  %947 = vmatpush1.msra.mxu0 0.0
  %948 = vmatprep.subr.mxu0 0.0
  %949 = vmatpush1.msra.mxu0 0.0
  %950 = vmatprep.subr.mxu0 0.0
  %951 = vmatpush1.msra.mxu0 0.0
  %952 = vmatprep.subr.mxu0 0.0
  %953 = vmatpush1.msra.mxu0 0.0
  %954 = vmatprep.subr.mxu0 0.0
  %955 = vmatpush1.msra.mxu0 0.0
  %956 = vmatprep.subr.mxu0 0.0
  %957 = vmatpush1.msra.mxu0 0.0
  %958 = vmatprep.subr.mxu0 0.0
  %959 = vmatpush1.msra.mxu0 0.0
  %960 = vmatprep.subr.mxu0 0.0
  %961 = vmatpush1.msra.mxu0 0.0
  %962 = vmatprep.subr.mxu0 0.0
  %963 = vmatpush1.msra.mxu0 0.0
  %964 = vmatprep.subr.mxu0 0.0
  %965 = vmatpush1.msra.mxu0 0.0
  %966 = vmatprep.subr.mxu0 0.0
  %967 = vmatpush1.msra.mxu0 0.0
  %968 = vmatprep.subr.mxu0 0.0
  %969 = vmatpush1.msra.mxu0 0.0
  %970 = vmatprep.subr.mxu0 0.0
  %971 = vmatpush1.msra.mxu0 0.0
  %972 = vmatprep.mubr.f32.mxu0 0.0
  %973 = vmatmul.mubr.f32.gmra.mrb[0].mxu0 %v186
  %v974 = vpop.f32.mrb[0].mxu0
  %v975 = vadd.f32 0.0, %v974
  %v976 = vpop.f32.mrb[0].mxu0
  %977 = vmatprep.mubr.f32.mxu0 0.0
  %978 = vmatmul.mubr.f32.gmra.mrb[0].mxu0 %v189
  %v979 = vpop.f32.mrb[0].mxu0
  %v980 = vadd.f32 0.0, %v979
  %v981 = vpop.f32.mrb[0].mxu0
  %982 = vmatprep.mubr.f32.mxu0 0.0
  %983 = vmatmul.mubr.f32.gmra.mrb[0].mxu0 %v192
  %v984 = vpop.f32.mrb[0].mxu0
  %v985 = vadd.f32 0.0, %v984
  %v986 = vpop.f32.mrb[0].mxu0
  %987 = vmatprep.mubr.f32.mxu0 0.0
  %988 = vmatmul.mubr.f32.gmra.mrb[0].mxu0 %v195
  %v989 = vpop.f32.mrb[0].mxu0
  %v990 = vadd.f32 0.0, %v989
  %v991 = vpop.f32.mrb[0].mxu0
  %992 = vmatprep.mubr.f32.mxu0 0.0
  %993 = vmatmul.mubr.f32.gmra.mrb[0].mxu0 %v198
  %v994 = vpop.f32.mrb[0].mxu0
  %v995 = vadd.f32 0.0, %v994
  %v996 = vpop.f32.mrb[0].mxu0
  %997 = vmatprep.mubr.f32.mxu0 0.0
  %998 = vmatmul.mubr.f32.gmra.mrb[0].mxu0 %v201
  %v999 = vpop.f32.mrb[0].mxu0
  %v1000 = vadd.f32 0.0, %v999
  %v1001 = vpop.f32.mrb[0].mxu0
  %1002 = vmatprep.mubr.f32.mxu0 0.0
  %1003 = vmatmul.mubr.f32.gmra.mrb[0].mxu0 %v204
  %v1004 = vpop.f32.mrb[0].mxu0
  %v1005 = vadd.f32 0.0, %v1004
  %v1006 = vpop.f32.mrb[0].mxu0
  %1007 = vmatprep.mubr.f32.mxu0 0.0
  %1008 = vmatmul.mubr.f32.gmra.mrb[0].mxu0 %v207
  %v1009 = vpop.f32.mrb[0].mxu0
  %v1010 = vadd.f32 0.0, %v1009
  %v1011 = vpop.f32.mrb[0].mxu0
  %1012 = vdwg.mxu0
  %1013 = vmatprep.subr.mxu0 0.0
  %1014 = vmatpush1.msra.mxu0 %v975
  %1015 = vmatprep.subr.mxu0 0.0
  %1016 = vmatpush1.msra.mxu0 %v980
  %1017 = vmatprep.subr.mxu0 0.0
  %1018 = vmatpush1.msra.mxu0 %v985
  %1019 = vmatprep.subr.mxu0 0.0
  %1020 = vmatpush1.msra.mxu0 %v990
  %1021 = vmatprep.subr.mxu0 0.0
  %1022 = vmatpush1.msra.mxu0 %v995
  %1023 = vmatprep.subr.mxu0 0.0
  %1024 = vmatpush1.msra.mxu0 %v1000
  %1025 = vmatprep.subr.mxu0 0.0
  %1026 = vmatpush1.msra.mxu0 %v1005
  %1027 = vmatprep.subr.mxu0 0.0
  %1028 = vmatpush1.msra.mxu0 %v1010
  %1029 = vmatprep.subr.mxu0 0.0
  %1030 = vmatpush1.msra.mxu0 0.0
  %1031 = vmatprep.subr.mxu0 0.0
  %1032 = vmatpush1.msra.mxu0 0.0
  %1033 = vmatprep.subr.mxu0 0.0
  %1034 = vmatpush1.msra.mxu0 0.0
  %1035 = vmatprep.subr.mxu0 0.0
  %1036 = vmatpush1.msra.mxu0 0.0
  %1037 = vmatprep.subr.mxu0 0.0
  %1038 = vmatpush1.msra.mxu0 0.0
  %1039 = vmatprep.subr.mxu0 0.0
  %1040 = vmatpush1.msra.mxu0 0.0
  %1041 = vmatprep.subr.mxu0 0.0
  %1042 = vmatpush1.msra.mxu0 0.0
  %1043 = vmatprep.subr.mxu0 0.0
  %1044 = vmatpush1.msra.mxu0 0.0
  %1045 = vmatprep.subr.mxu0 0.0
  %1046 = vmatpush1.msra.mxu0 0.0
  %1047 = vmatprep.subr.mxu0 0.0
  %1048 = vmatpush1.msra.mxu0 0.0
  %1049 = vmatprep.subr.mxu0 0.0
  %1050 = vmatpush1.msra.mxu0 0.0
  %1051 = vmatprep.subr.mxu0 0.0
  %1052 = vmatpush1.msra.mxu0 0.0
  %1053 = vmatprep.subr.mxu0 0.0
  %1054 = vmatpush1.msra.mxu0 0.0
  %1055 = vmatprep.subr.mxu0 0.0
  %1056 = vmatpush1.msra.mxu0 0.0
  %1057 = vmatprep.subr.mxu0 0.0
  %1058 = vmatpush1.msra.mxu0 0.0
  %1059 = vmatprep.subr.mxu0 0.0
  %1060 = vmatpush1.msra.mxu0 0.0
  %1061 = vmatprep.subr.mxu0 0.0
  %1062 = vmatpush1.msra.mxu0 0.0
  %1063 = vmatprep.subr.mxu0 0.0
  %1064 = vmatpush1.msra.mxu0 0.0
  %1065 = vmatprep.subr.mxu0 0.0
  %1066 = vmatpush1.msra.mxu0 0.0
  %1067 = vmatprep.subr.mxu0 0.0
  %1068 = vmatpush1.msra.mxu0 0.0
  %1069 = vmatprep.subr.mxu0 0.0
  %1070 = vmatpush1.msra.mxu0 0.0
  %1071 = vmatprep.subr.mxu0 0.0
  %1072 = vmatpush1.msra.mxu0 0.0
  %1073 = vmatprep.subr.mxu0 0.0
  %1074 = vmatpush1.msra.mxu0 0.0
  %1075 = vmatprep.subr.mxu0 0.0
  %1076 = vmatpush1.msra.mxu0 0.0
  %1077 = vmatprep.mubr.f32.mxu0 0.0
  %1078 = vmatmul.mubr.f32.gmra.mrb[0].mxu0 %v186
  %v1079 = vpop.f32.mrb[0].mxu0
  %v1080 = vadd.f32 0.0, %v1079
  %v1081 = vpop.f32.mrb[0].mxu0
  %1082 = vmatprep.mubr.f32.mxu0 0.0
  %1083 = vmatmul.mubr.f32.gmra.mrb[0].mxu0 %v189
  %v1084 = vpop.f32.mrb[0].mxu0
  %v1085 = vadd.f32 0.0, %v1084
  %v1086 = vpop.f32.mrb[0].mxu0
  %1087 = vmatprep.mubr.f32.mxu0 0.0
  %1088 = vmatmul.mubr.f32.gmra.mrb[0].mxu0 %v192
  %v1089 = vpop.f32.mrb[0].mxu0
  %v1090 = vadd.f32 0.0, %v1089
  %v1091 = vpop.f32.mrb[0].mxu0
  %1092 = vmatprep.mubr.f32.mxu0 0.0
  %1093 = vmatmul.mubr.f32.gmra.mrb[0].mxu0 %v195
  %v1094 = vpop.f32.mrb[0].mxu0
  %v1095 = vadd.f32 0.0, %v1094
  %v1096 = vpop.f32.mrb[0].mxu0
  %1097 = vmatprep.mubr.f32.mxu0 0.0
  %1098 = vmatmul.mubr.f32.gmra.mrb[0].mxu0 %v198
  %v1099 = vpop.f32.mrb[0].mxu0
  %v1100 = vadd.f32 0.0, %v1099
  %v1101 = vpop.f32.mrb[0].mxu0
  %1102 = vmatprep.mubr.f32.mxu0 0.0
  %1103 = vmatmul.mubr.f32.gmra.mrb[0].mxu0 %v201
  %v1104 = vpop.f32.mrb[0].mxu0
  %v1105 = vadd.f32 0.0, %v1104
  %v1106 = vpop.f32.mrb[0].mxu0
  %1107 = vmatprep.mubr.f32.mxu0 0.0
  %1108 = vmatmul.mubr.f32.gmra.mrb[0].mxu0 %v204
  %v1109 = vpop.f32.mrb[0].mxu0
  %v1110 = vadd.f32 0.0, %v1109
  %v1111 = vpop.f32.mrb[0].mxu0
  %1112 = vmatprep.mubr.f32.mxu0 0.0
  %1113 = vmatmul.mubr.f32.gmra.mrb[0].mxu0 %v207
  %v1114 = vpop.f32.mrb[0].mxu0
  %v1115 = vadd.f32 0.0, %v1114
  %v1116 = vpop.f32.mrb[0].mxu0
  %1117 = vdwg.mxu0
  %1118 = vst.msk [vmem:[%s5] sm:$0xff] %vm421, %v276
  %1119 = vst.msk [vmem:[%s5 + $0x8] sm:$0xff] %vm421, %v281
  %1120 = vst.msk [vmem:[%s5 + $0x10] sm:$0xff] %vm421, %v286
  %1121 = vst.msk [vmem:[%s5 + $0x18] sm:$0xff] %vm421, %v291
  %1122 = vst.msk [vmem:[%s5 + $0x20] sm:$0xff] %vm421, %v296
  %1123 = vst.msk [vmem:[%s5 + $0x28] sm:$0xff] %vm421, %v301
  %1124 = vst.msk [vmem:[%s5 + $0x30] sm:$0xff] %vm421, %v306
  %1125 = vst.msk [vmem:[%s5 + $0x38] sm:$0xff] %vm421, %v311
  %1126 = vst.msk [vmem:[%s6] sm:$0xff] %vm421, %v381
  %1127 = vst.msk [vmem:[%s6 + $0x8] sm:$0xff] %vm421, %v386
  %1128 = vst.msk [vmem:[%s6 + $0x10] sm:$0xff] %vm421, %v391
  %1129 = vst.msk [vmem:[%s6 + $0x18] sm:$0xff] %vm421, %v396
  %1130 = vst.msk [vmem:[%s6 + $0x20] sm:$0xff] %vm421, %v401
  %1131 = vst.msk [vmem:[%s6 + $0x28] sm:$0xff] %vm421, %v406
  %1132 = vst.msk [vmem:[%s6 + $0x30] sm:$0xff] %vm421, %v411
  %1133 = vst.msk [vmem:[%s6 + $0x38] sm:$0xff] %vm421, %v416
  %1134 = vst.msk [vmem:[%s7] sm:$0xff] %vm421, %v626
  %1135 = vst.msk [vmem:[%s7 + $0x8] sm:$0xff] %vm421, %v631
  %1136 = vst.msk [vmem:[%s7 + $0x10] sm:$0xff] %vm421, %v636
  %1137 = vst.msk [vmem:[%s7 + $0x18] sm:$0xff] %vm421, %v641
  %1138 = vst.msk [vmem:[%s7 + $0x20] sm:$0xff] %vm421, %v646
  %1139 = vst.msk [vmem:[%s7 + $0x28] sm:$0xff] %vm421, %v651
  %1140 = vst.msk [vmem:[%s7 + $0x30] sm:$0xff] %vm421, %v656
  %1141 = vst.msk [vmem:[%s7 + $0x38] sm:$0xff] %vm421, %v661
  %1142 = vst.msk [vmem:[%s8] sm:$0xff] %vm421, %v731
  %1143 = vst.msk [vmem:[%s8 + $0x8] sm:$0xff] %vm421, %v736
  %1144 = vst.msk [vmem:[%s8 + $0x10] sm:$0xff] %vm421, %v741
  %1145 = vst.msk [vmem:[%s8 + $0x18] sm:$0xff] %vm421, %v746
  %1146 = vst.msk [vmem:[%s8 + $0x20] sm:$0xff] %vm421, %v751
  %1147 = vst.msk [vmem:[%s8 + $0x28] sm:$0xff] %vm421, %v756
  %1148 = vst.msk [vmem:[%s8 + $0x30] sm:$0xff] %vm421, %v761
  %1149 = vst.msk [vmem:[%s8 + $0x38] sm:$0xff] %vm421, %v766
  %1150 = vst.msk [vmem:[%s9] sm:$0xff] %vm46, %v975
  %1151 = vst.msk [vmem:[%s9 + $0x8] sm:$0xff] %vm46, %v980
  %1152 = vst.msk [vmem:[%s9 + $0x10] sm:$0xff] %vm46, %v985
  %1153 = vst.msk [vmem:[%s9 + $0x18] sm:$0xff] %vm46, %v990
  %1154 = vst.msk [vmem:[%s9 + $0x20] sm:$0xff] %vm46, %v995
  %1155 = vst.msk [vmem:[%s9 + $0x28] sm:$0xff] %vm46, %v1000
  %1156 = vst.msk [vmem:[%s9 + $0x30] sm:$0xff] %vm46, %v1005
  %1157 = vst.msk [vmem:[%s9 + $0x38] sm:$0xff] %vm46, %v1010
  %1158 = vst.msk [vmem:[%s10] sm:$0xff] %vm46, %v1080
  %1159 = vst.msk [vmem:[%s10 + $0x8] sm:$0xff] %vm46, %v1085
  %1160 = vst.msk [vmem:[%s10 + $0x10] sm:$0xff] %vm46, %v1090
  %1161 = vst.msk [vmem:[%s10 + $0x18] sm:$0xff] %vm46, %v1095
  %1162 = vst.msk [vmem:[%s10 + $0x20] sm:$0xff] %vm46, %v1100
  %1163 = vst.msk [vmem:[%s10 + $0x28] sm:$0xff] %vm46, %v1105
  %1164 = vst.msk [vmem:[%s10 + $0x30] sm:$0xff] %vm46, %v1110
  %1165 = vst.msk [vmem:[%s10 + $0x38] sm:$0xff] %vm46, %v1115
  // Predicated region
  $region22: #{tpu_custom_call.1} parent=0 // pred_check
    _
  $region23: #{tpu_custom_call.1} parent=0 // pred_check_branch
    %1167 = sbr.rel (0) target = $region25
  $region24: #{tpu_custom_call.1} parent=0 // pred_region
    _
  $region25: #{tpu_custom_call.1} parent=0 // pred_fallthru
    _
  // Predicated region
  $region26: #{tpu_custom_call.1} parent=0 // pred_check
    _
  $region27: #{tpu_custom_call.1} parent=0 // pred_check_branch
    %1169 = sbr.rel (0) target = $region29
  $region28: #{tpu_custom_call.1} parent=0 // pred_region
    _
  $region29: #{tpu_custom_call.1} parent=0 // pred_fallthru
    _
  // Predicated region
  $region30: #{tpu_custom_call.1} parent=0 // pred_check
    _
  $region31: #{tpu_custom_call.1} parent=0 // pred_check_branch
    %1171 = sbr.rel (0) target = $region33
  $region32: #{tpu_custom_call.1} parent=0 // pred_region
    _
  $region33: #{tpu_custom_call.1} parent=0 // pred_fallthru
    _
  // Predicated region
  $region34: #{tpu_custom_call.1} parent=0 // pred_check
    _
  $region35: #{tpu_custom_call.1} parent=0 // pred_check_branch
    %1173 = sbr.rel (0) target = $region37
  $region36: #{tpu_custom_call.1} parent=0 // pred_region
    _
  $region37: #{tpu_custom_call.1} parent=0 // pred_fallthru
    _
  // Predicated region
  $region38: #{tpu_custom_call.1} parent=0 // pred_check
    _
  $region39: #{tpu_custom_call.1} parent=0 // pred_check_branch
    %1175 = sbr.rel (0) target = $region41
  $region40: #{tpu_custom_call.1} parent=0 // pred_region
    _
  $region41: #{tpu_custom_call.1} parent=0 // pred_fallthru
    _
  // Predicated region
  $region42: #{tpu_custom_call.1} parent=0 // pred_check
    _
  $region43: #{tpu_custom_call.1} parent=0 // pred_check_branch
    %1177 = sbr.rel (0) target = $region45
  $region44: #{tpu_custom_call.1} parent=0 // pred_region
    _
  $region45: #{tpu_custom_call.1} parent=0 // pred_fallthru
    _
  // Predicated region
  $region46: #{tpu_custom_call.1} parent=0 // pred_check
    _
  $region47: #{tpu_custom_call.1} parent=0 // pred_check_branch
    %1179 = sbr.rel (0) target = $region49
  $region48: #{tpu_custom_call.1} parent=0 // pred_region
    _
  $region49: #{tpu_custom_call.1} parent=0 // pred_fallthru
    _
  // Predicated region
  $region50: #{tpu_custom_call.1} parent=0 // pred_check
    _
  $region51: #{tpu_custom_call.1} parent=0 // pred_check_branch
    %1181 = sbr.rel (0) target = $region53
  $region52: #{tpu_custom_call.1} parent=0 // pred_region
    _
  $region53: #{tpu_custom_call.1} parent=0 // pred_fallthru
    _
  // Predicated region
  $region54: #{tpu_custom_call.1} parent=0 // pred_check
    _
  $region55: #{tpu_custom_call.1} parent=0 // pred_check_branch
    %1183 = sbr.rel (0) target = $region57
  $region56: #{tpu_custom_call.1} parent=0 // pred_region
    _
  $region57: #{tpu_custom_call.1} parent=0 // pred_fallthru
    _
  // Predicated region
  $region58: #{tpu_custom_call.1} parent=0 // pred_check
    _
  $region59: #{tpu_custom_call.1} parent=0 // pred_check_branch
    %1185 = sbr.rel (0) target = $region61
  $region60: #{tpu_custom_call.1} parent=0 // pred_region
    _
  $region61: #{tpu_custom_call.1} parent=0 // pred_fallthru
    _
  // Predicated region
  $region62: #{tpu_custom_call.1} parent=0 // pred_check
    _
  $region63: #{tpu_custom_call.1} parent=0 // pred_check_branch
    %1187 = sbr.rel (0) target = $region65
  $region64: #{tpu_custom_call.1} parent=0 // pred_region
    _
  $region65: #{tpu_custom_call.1} parent=0 // pred_fallthru
    _
  // Predicated region
  $region66: #{tpu_custom_call.1} parent=0 // pred_check
    _
  $region67: #{tpu_custom_call.1} parent=0 // pred_check_branch
    %1189 = sbr.rel (0) target = $region69
  $region68: #{tpu_custom_call.1} parent=0 // pred_region
    _
  $region69: #{tpu_custom_call.1} parent=0 // pred_fallthru
    _

</llo_original>
